<compile_context>
chip_gen: v6e
topology: v6e:2x2x1
jax: 0.10.0
libtpu: 0.0.40
codegen_flags: <defaults>
</compile_context>

<pallas_src>
import functools

import jax
import jax.numpy as jnp
from jax.experimental import pallas as pl
from jax.experimental.pallas import tpu as pltpu


def _round_up(x, m):
    return ((x + m - 1) // m) * m


def _choose_tile(n, pref, align):
    """Largest multiple of `align` <= pref that divides n; else n (full extent)."""
    t = min(pref, n)
    t = (t // align) * align
    while t >= align:
        if n % t == 0:
            return t
        t -= align
    return n


def _gat_proj_kernel(x_ref, w_ref, a2_ref, bias_ref, h_ref, fsrc_ref, fdst_ref):
    # h = x @ W_pad (f32 accumulation on the MXU); padded columns of W are zero.
    h = jnp.dot(x_ref[...], w_ref[...], preferred_element_type=jnp.float32)
    a2 = a2_ref[...]                                   # (2, F_pad) f32, zero-padded
    # Per-node logit halves on the VPU (multiply + cross-lane reduce) instead of
    # two 1-wide MXU matmuls.  Padded/ones columns contribute 0 (a2 is zero there).
    fsrc_ref[...] = jnp.sum(h * a2[0:1, :], axis=-1, keepdims=True)
    fdst_ref[...] = jnp.sum(h * a2[1:2, :], axis=-1, keepdims=True)
    # bias puts 1.0 in the extra "ones" column -> att @ h_pad yields the softmax
    # row-sum in that column for free in stage 2.
    h_ref[...] = (h + bias_ref[...]).astype(h_ref.dtype)


def _gat_attn_kernel(fsrc_ref, fdst_ref, adj_ref, h_ref, out_ref,
                     m_scr, acc_scr, *, alpha, concat, sum_col, tk, h_resident):
    kj = pl.program_id(1)

    @pl.when(kj == 0)
    def _init():
        m_scr[...] = jnp.full(m_scr.shape, -jnp.inf, m_scr.dtype)
        acc_scr[...] = jnp.zeros(acc_scr.shape, acc_scr.dtype)

    # e[i, j] = LeakyReLU(f_src[i] + f_dst[j]): 2 VALU ops via max(e, alpha*e).
    e = fsrc_ref[...] + fdst_ref[...]                  # (TQ,1)+(1,TK) -> (TQ,TK), f32
    e = jnp.maximum(e, alpha * e)

    # Online softmax update (all softmax math stays f32).  The max is taken over
    # UNMASKED logits (a larger-than-needed m only shrinks exp arguments); masked
    # terms are zeroed by multiplying with the 0/1 adjacency -- no compare/select
    # on the O(N^2) element-wise path.
    m_prev = m_scr[...]
    m_new = jnp.maximum(m_prev, jnp.max(e, axis=1, keepdims=True))
    corr = jnp.exp(m_prev - m_new)
    p = jnp.exp(e - m_new) * adj_ref[...].astype(jnp.float32)

    if h_resident:
        h_tile = h_ref[pl.ds(pl.multiple_of(kj * tk, tk), tk), :]
    else:
        h_tile = h_ref[...]
    # Lane-dense (TQ,TK)x(TK,F_pad) MXU matmul; the ones column of h_tile makes
    # acc[:, sum_col] carry the running softmax denominator.
    acc_scr[...] = corr * acc_scr[...] + jnp.dot(
        p.astype(h_tile.dtype), h_tile, preferred_element_type=jnp.float32)
    m_scr[...] = m_new

    @pl.when(kj == pl.num_programs(1) - 1)
    def _finalize():
        acc = acc_scr[...]
        l = acc[:, sum_col:sum_col + 1]                # softmax row-sum (ones column)
        out = acc * pl.reciprocal(l, approx=True)
        if concat:
            # ELU; min() keeps exp() off large positives (no transient inf).
            out = jnp.where(out > 0, out, jnp.exp(jnp.minimum(out, 0.0)) - 1.0)
        out_ref[...] = out.astype(out_ref.dtype)


def graph_attention_layer(x, adj, W, a, *, alpha=0.2, concat=True,
                          mxu_dtype=jnp.bfloat16, tq=512, tk=2048,
                          vmem_limit_bytes=48 * 1024 * 1024,
                          h_resident_bytes=8 * 1024 * 1024,
                          adj_buffers=None):
    """GAT forward. x:(N,Fin), adj:(N,N), W:(Fin,Fout), a:(2*Fout,1) -> (N,Fout).

    mxu_dtype: storage/MXU dtype of h (and the p operand of att@h).  bf16 default:
      2x MXU throughput on v6e/v7x, half the h HBM/VMEM traffic; softmax math and
      the logit projections stay f32.  Pass jnp.float32 for strict parity.
    adj_buffers: optional pipeline depth override for the adjacency stream
      (e.g. 3 on v5e if the int8 adj DMA is exposed).
    """
    N, in_features = x.shape
    out_features = W.shape[1]

    h_dtype = jnp.dtype(mxu_dtype) if mxu_dtype is not None else jnp.dtype(x.dtype)

    # Lane-dense padded feature width: out_features columns, one "ones" column
    # (row-sum fold), zero padding up to a multiple of 128.
    f_pad = _round_up(out_features + 1, 128)
    sum_col = out_features

    # Stage-1 operands stay in x's precision (accuracy loss is confined to att@h).
    w_pad = jnp.zeros((in_features, f_pad), jnp.float32).at[:, :out_features].set(
        W.astype(jnp.float32)).astype(x.dtype)
    a2 = jnp.zeros((2, f_pad), jnp.float32).at[:, :out_features].set(
        a.astype(jnp.float32).reshape(2, out_features))
    ones_bias = jnp.zeros((1, f_pad), jnp.float32).at[0, sum_col].set(1.0)

    # adj only feeds a 0/1 mask: stream the O(N^2) operand as int8.
    adj_i8 = (adj > 0).astype(jnp.int8)

    # Tiles: TQ 32-aligned (int8 native (32,128) tiling) and capped at N/2 so both
    # v7x TensorCores get at least one row tile; TK lane-aligned (128).
    tq_pref = min(tq, max(N // 2, 32))
    TQ = _choose_tile(N, tq_pref, 32)
    TK = _choose_tile(N, tk, 128)
    n_row, n_col = N // TQ, N // TK

    # ---- Stage 1: h_pad = [x @ W | 1 | 0...], f_src, f_dst -------------------
    h_pad, f_src, f_dst = pl.pallas_call(
        _gat_proj_kernel,
        out_shape=(jax.ShapeDtypeStruct((N, f_pad), h_dtype),
                   jax.ShapeDtypeStruct((N, 1), jnp.float32),
                   jax.ShapeDtypeStruct((N, 1), jnp.float32)),
        grid_spec=pltpu.PrefetchScalarGridSpec(
            num_scalar_prefetch=0,
            grid=(n_row,),
            in_specs=[pl.BlockSpec((TQ, in_features), lambda i: (i, 0)),
                      pl.BlockSpec((in_features, f_pad), lambda i: (0, 0)),
                      pl.BlockSpec((2, f_pad), lambda i: (0, 0)),
                      pl.BlockSpec((1, f_pad), lambda i: (0, 0))],
            out_specs=[pl.BlockSpec((TQ, f_pad), lambda i: (i, 0)),
                       pl.BlockSpec((TQ, 1), lambda i: (i, 0)),
                       pl.BlockSpec((TQ, 1), lambda i: (i, 0))]),
        compiler_params=pltpu.CompilerParams(
            dimension_semantics=("parallel",),
            vmem_limit_bytes=vmem_limit_bytes),
    )(x, w_pad, a2, ones_bias)

    # Column-side logits as a (1, N) row vector: cheap contiguous reshape outside
    # the kernel, no in-kernel sublane<->lane transpose.
    f_dst_row = f_dst.reshape(1, N)

    # Keep h_pad fully VMEM-resident across the column loop when it fits (constant
    # block index -> fetched once); otherwise stream (TK, F_pad) tiles indexed by j.
    itemsize_h = jnp.dtype(h_dtype).itemsize
    h_resident = (n_col > 1) and (N * f_pad * itemsize_h <= h_resident_bytes)
    if h_resident:
        h_spec = pl.BlockSpec((N, f_pad), lambda i, j: (0, 0))
    else:
        h_spec = pl.BlockSpec((TK, f_pad), lambda i, j: (j, 0))

    adj_spec_kwargs = {}
    if adj_buffers is not None and adj_buffers != 2:
        adj_spec_kwargs["pipeline_mode"] = pl.Buffered(adj_buffers)
    adj_spec = pl.BlockSpec((TQ, TK), lambda i, j: (i, j), **adj_spec_kwargs)

    h_reads = 1 if h_resident else n_row
    cost = pl.CostEstimate(
        flops=int(2 * N * N * f_pad + 6 * N * N),
        transcendentals=int(N * N + N * n_col),
        bytes_accessed=int(N * N * 1                                   # adj (int8)
                           + h_reads * N * f_pad * itemsize_h          # h_pad
                           + N * f_pad * jnp.dtype(x.dtype).itemsize   # out
                           + 8 * N))                                   # f_src / f_dst

    # ---- Stage 2: tiled masked softmax + att @ h_pad (online softmax) --------
    out_pad = pl.pallas_call(
        functools.partial(_gat_attn_kernel, alpha=alpha, concat=concat,
                          sum_col=sum_col, tk=TK, h_resident=h_resident),
        out_shape=jax.ShapeDtypeStruct((N, f_pad), x.dtype),
        grid_spec=pltpu.PrefetchScalarGridSpec(
            num_scalar_prefetch=0,
            grid=(n_row, n_col),
            in_specs=[pl.BlockSpec((TQ, 1), lambda i, j: (i, 0)),       # f_src
                      pl.BlockSpec((1, TK), lambda i, j: (0, j)),       # f_dst row
                      adj_spec,                                         # adj int8
                      h_spec],                                          # h_pad
            out_specs=pl.BlockSpec((TQ, f_pad), lambda i, j: (i, 0)),
            scratch_shapes=[pltpu.VMEM((TQ, 1), jnp.float32),           # running max
                            pltpu.VMEM((TQ, f_pad), jnp.float32)]),     # acc (+ row-sum col)
        compiler_params=pltpu.CompilerParams(
            dimension_semantics=("parallel", "arbitrary"),
            vmem_limit_bytes=vmem_limit_bytes),
        cost_estimate=cost,
    )(f_src, f_dst_row, adj_i8, h_pad)

    return out_pad[:, :out_features]


def _xavier_uniform(key, shape, gain):
    fan_in, fan_out = shape[0], shape[1]
    bound = gain * jnp.sqrt(6.0 / (fan_in + fan_out))
    return jax.random.uniform(key, shape, jnp.float32, -bound, bound)


def _reference(x, adj, W, a, alpha, concat):
    # Pure-JAX reference (same math as the PyTorch forward, eval mode).
    h = x @ W
    F = W.shape[1]
    e = (h @ a[:F, :]) + (h @ a[F:, :]).T
    e = jnp.where(e > 0, e, alpha * e)
    att = jnp.where(adj > 0, e, -9e15)
    att = jax.nn.softmax(att, axis=1)
    hp = att @ h
    if concat:
        hp = jnp.where(hp > 0, hp, jnp.exp(jnp.minimum(hp, 0.0)) - 1.0)
    return hp


def _make_case(key, N, fin, fout, density):
    k1, k2, k3, k4 = jax.random.split(key, 4)
    x = jax.random.normal(k1, (N, fin), jnp.float32)
    adj = (jax.random.uniform(k2, (N, N)) > density).astype(jnp.float32)
    adj = jnp.maximum(adj, jnp.eye(N, dtype=jnp.float32))
    W = _xavier_uniform(k3, (fin, fout), 1.414)
    a = _xavier_uniform(k4, (2 * fout, 1), 1.414)
    return x, adj, W, a


if __name__ == "__main__":
    alpha = 0.2
    key = jax.random.PRNGKey(0)
    k1, k2, k3 = jax.random.split(key, 3)

    # Case 1: tiny problem matching the original module test (single-tile grid),
    # f32 MXU path, tight tolerance.
    x1, adj1, W1, a1 = _make_case(k1, 8, 16, 8, 0.5)
    out1 = graph_attention_layer(x1, adj1, W1, a1, alpha=alpha, concat=True,
                                 mxu_dtype=jnp.float32)
    jax.block_until_ready(out1)
    ref1 = _reference(x1, adj1, W1, a1, alpha, True)
    assert jnp.allclose(out1, ref1, atol=3e-3, rtol=3e-3), "mismatch (N=8, f32)"

    # Case 2: default bf16 MXU path, default tiles (2 parallel row tiles).
    x2, adj2, W2, a2 = _make_case(k2, 256, 32, 8, 0.9)
    out2 = graph_attention_layer(x2, adj2, W2, a2, alpha=alpha, concat=True)
    jax.block_until_ready(out2)
    ref2 = _reference(x2, adj2, W2, a2, alpha, True)
    assert jnp.allclose(out2, ref2, atol=2e-2, rtol=2e-2), "mismatch (N=256, bf16)"

    # Case 3: multi-column online-softmax path + VMEM-resident h (grid = (4, 2)),
    # f32 MXU path, concat=False branch, tight tolerance.
    x3, adj3, W3, a3 = _make_case(k3, 256, 32, 8, 0.9)
    out3 = graph_attention_layer(x3, adj3, W3, a3, alpha=alpha, concat=False,
                                 mxu_dtype=jnp.float32, tq=64, tk=128)
    jax.block_until_ready(out3)
    ref3 = _reference(x3, adj3, W3, a3, alpha, False)
    assert jnp.allclose(out3, ref3, atol=3e-3, rtol=3e-3), "mismatch (N=256, tiled)"

    print("KERNEL_OK")
</pallas_src>

<mosaic_0001>
module attributes {stable_mosaic.version = 11 : i64} {
  func.func @_gat_proj_kernel(%arg0: i32, %arg1: memref<8x16xf32, #tpu.memory_space<vmem>>, %arg2: memref<16x128xf32, #tpu.memory_space<vmem>>, %arg3: memref<2x128xf32, #tpu.memory_space<vmem>>, %arg4: memref<1x128xf32, #tpu.memory_space<vmem>>, %arg5: memref<8x128xf32, #tpu.memory_space<vmem>>, %arg6: memref<8x1xf32, #tpu.memory_space<vmem>>, %arg7: memref<8x1xf32, #tpu.memory_space<vmem>>) attributes {dimension_semantics = [#tpu.dimension_semantics<parallel>], iteration_bounds = array<i64: 1>, scalar_prefetch = 0 : i64, scratch_operands = 0 : i64, tpu.core_type = #tpu.core_type<tc>, window_params = [{transform_indices = @transform_0, window_bounds = array<i64: 8, 16>}, {pipeline_mode = #tpu.pipeline_mode<synchronous>, transform_indices = @transform_1, window_bounds = array<i64: 16, 128>}, {pipeline_mode = #tpu.pipeline_mode<synchronous>, transform_indices = @transform_2, window_bounds = array<i64: 2, 128>}, {pipeline_mode = #tpu.pipeline_mode<synchronous>, transform_indices = @transform_3, window_bounds = array<i64: 1, 128>}, {transform_indices = @transform_4, window_bounds = array<i64: 8, 128>}, {transform_indices = @transform_5, window_bounds = array<i64: 8, 1>}, {transform_indices = @transform_6, window_bounds = array<i64: 8, 1>}]} {
    %c0 = arith.constant 0 : index
    %c0_0 = arith.constant 0 : index
    %0 = vector.load %arg1[%c0, %c0_0] : memref<8x16xf32, #tpu.memory_space<vmem>>, vector<8x16xf32>
    %c0_1 = arith.constant 0 : index
    %c0_2 = arith.constant 0 : index
    %1 = vector.load %arg2[%c0_1, %c0_2] : memref<16x128xf32, #tpu.memory_space<vmem>>, vector<16x128xf32>
    %cst = arith.constant dense<0.000000e+00> : vector<8x128xf32>
    %2 = tpu.matmul %0, %1, %cst {dimension_numbers = #tpu.dot_dimension_numbers<[1], [0], [0], [1], [0, 0, 1, 1], [], []>} : vector<8x16xf32>, vector<16x128xf32>, vector<8x128xf32> -> vector<8x128xf32>
    %c0_3 = arith.constant 0 : index
    %c0_4 = arith.constant 0 : index
    %3 = vector.load %arg3[%c0_3, %c0_4] : memref<2x128xf32, #tpu.memory_space<vmem>>, vector<2x128xf32>
    %4 = vector.extract_strided_slice %3 {offsets = [0, 0], sizes = [1, 128], strides = [1, 1]} : vector<2x128xf32> to vector<1x128xf32>
    %5 = vector.broadcast %4 : vector<1x128xf32> to vector<8x128xf32>
    %6 = arith.mulf %2, %5 : vector<8x128xf32>
    %cst_5 = arith.constant dense<0.000000e+00> : vector<8xf32>
    %7 = vector.multi_reduction <add>, %6, %cst_5 [1] : vector<8x128xf32> to vector<8xf32>
    %8 = vector.shape_cast %7 : vector<8xf32> to vector<8x1xf32>
    %c0_6 = arith.constant 0 : index
    %c0_7 = arith.constant 0 : index
    %9 = vector.load %arg6[%c0_6, %c0_7] : memref<8x1xf32, #tpu.memory_space<vmem>>, vector<8x1xf32>
    tpu.vector_store %arg6[%c0_6, %c0_7], %8 {strides = array<i32>} : memref<8x1xf32, #tpu.memory_space<vmem>>, vector<8x1xf32>,
    %10 = vector.extract_strided_slice %3 {offsets = [1, 0], sizes = [1, 128], strides = [1, 1]} : vector<2x128xf32> to vector<1x128xf32>
    %11 = vector.broadcast %10 : vector<1x128xf32> to vector<8x128xf32>
    %12 = arith.mulf %2, %11 : vector<8x128xf32>
    %cst_8 = arith.constant dense<0.000000e+00> : vector<8xf32>
    %13 = vector.multi_reduction <add>, %12, %cst_8 [1] : vector<8x128xf32> to vector<8xf32>
    %14 = vector.shape_cast %13 : vector<8xf32> to vector<8x1xf32>
    %c0_9 = arith.constant 0 : index
    %c0_10 = arith.constant 0 : index
    %15 = vector.load %arg7[%c0_9, %c0_10] : memref<8x1xf32, #tpu.memory_space<vmem>>, vector<8x1xf32>
    tpu.vector_store %arg7[%c0_9, %c0_10], %14 {strides = array<i32>} : memref<8x1xf32, #tpu.memory_space<vmem>>, vector<8x1xf32>,
    %c0_11 = arith.constant 0 : index
    %c0_12 = arith.constant 0 : index
    %16 = vector.load %arg4[%c0_11, %c0_12] : memref<1x128xf32, #tpu.memory_space<vmem>>, vector<1x128xf32>
    %17 = vector.broadcast %16 : vector<1x128xf32> to vector<8x128xf32>
    %18 = arith.addf %2, %17 : vector<8x128xf32>
    %c0_13 = arith.constant 0 : index
    %c0_14 = arith.constant 0 : index
    %19 = vector.load %arg5[%c0_13, %c0_14] : memref<8x128xf32, #tpu.memory_space<vmem>>, vector<8x128xf32>
    tpu.vector_store %arg5[%c0_13, %c0_14], %18 {strides = array<i32>} : memref<8x128xf32, #tpu.memory_space<vmem>>, vector<8x128xf32>,
    return
  }
  func.func @transform_0(%arg0: i32) -> (i32, i32) {
    %c0_i32 = arith.constant 0 : i32
    %c0_i32_0 = arith.constant 0 : i32
    return %arg0, %c0_i32 : i32, i32
  }
  func.func @transform_1(%arg0: i32) -> (i32, i32) {
    %c0_i32 = arith.constant 0 : i32
    %c0_i32_0 = arith.constant 0 : i32
    %c0_i32_1 = arith.constant 0 : i32
    return %c0_i32, %c0_i32_0 : i32, i32
  }
  func.func @transform_2(%arg0: i32) -> (i32, i32) {
    %c0_i32 = arith.constant 0 : i32
    %c0_i32_0 = arith.constant 0 : i32
    %c0_i32_1 = arith.constant 0 : i32
    return %c0_i32, %c0_i32_0 : i32, i32
  }
  func.func @transform_3(%arg0: i32) -> (i32, i32) {
    %c0_i32 = arith.constant 0 : i32
    %c0_i32_0 = arith.constant 0 : i32
    %c0_i32_1 = arith.constant 0 : i32
    return %c0_i32, %c0_i32_0 : i32, i32
  }
  func.func @transform_4(%arg0: i32) -> (i32, i32) {
    %c0_i32 = arith.constant 0 : i32
    %c0_i32_0 = arith.constant 0 : i32
    return %arg0, %c0_i32 : i32, i32
  }
  func.func @transform_5(%arg0: i32) -> (i32, i32) {
    %c0_i32 = arith.constant 0 : i32
    %c0_i32_0 = arith.constant 0 : i32
    return %arg0, %c0_i32 : i32, i32
  }
  func.func @transform_6(%arg0: i32) -> (i32, i32) {
    %c0_i32 = arith.constant 0 : i32
    %c0_i32_0 = arith.constant 0 : i32
    return %arg0, %c0_i32 : i32, i32
  }
}

</mosaic_0001>

<llo_original>
// kernel: tpu_custom_call.1
$region0: #{tpu_custom_call.1}
  #allocation0 [shape = 'u32[]', space=smem, size = 0x4, offset = 0x4, fixed_abs, tag = 'smem constant byte address 0x4 - core index']
  #allocation1 [shape = 'u32[144,128]{1,0:T(1,128)}', space=vmem, size = 0x12000, scoped, tag = 'internal scratch']
  %s0 = inlined_call_operand.hbm [shape: f32[8,16], index: 0, kind: input, shape index: {}]
  %s1 = inlined_call_operand.hbm [shape: f32[16,128], index: 1, kind: input, shape index: {}]
  %s2 = inlined_call_operand.vmem [shape: f32[2,128], index: 2, kind: input, shape index: {}]
  %s3 = inlined_call_operand.vmem [shape: f32[1,128], index: 3, kind: input, shape index: {}]
  %s4 = inlined_call_operand.hbm [shape: f32[8,128], index: 4, kind: output, shape index: {0}]
  %s5 = inlined_call_operand.vmem [shape: f32[8,1], index: 5, kind: output, shape index: {1}]
  %s6 = inlined_call_operand.vmem [shape: f32[8,1], index: 6, kind: output, shape index: {2}]
  %7 = xla_tuple %s4, %s5, %s6
  %s8 = sld [smem:[#allocation0]]
  $region50: #{tpu_custom_call.1} parent=0
    _
  %s10 = ssub.s32 1, %s8
  %s11 = scalar_select 0, %s10, %s8
  $region1: #{tpu_custom_call.1} parent=0
    #allocation2 [shape = 'u8[4096]{0}', space=vmem, size = 0x1000, scoped, tag = 'input window, operand 0, single buffered']
    #allocation3 [shape = 's32[1]{0}', space=sflag, size = 0x4, scoped, tag = 'scoped memory for tpu_custom_call.1']
    #allocation4 [shape = 's32[1]{0}', space=sflag, size = 0x4, scoped, tag = 'scoped memory for tpu_custom_call.1']
    #allocation5 [shape = 'u8[8192]{0}', space=vmem, size = 0x2000, scoped, tag = 'input window, operand 1, single buffered']
    #allocation6 [shape = 's32[1]{0}', space=sflag, size = 0x4, scoped, tag = 'scoped memory for tpu_custom_call.1']
    #allocation7 [shape = 'u8[4096]{0}', space=vmem, size = 0x1000, scoped, tag = 'output window, operand 0, single buffered']
    %12 = vsyncpa [#allocation3], 0
    %13 = vsyncpa [#allocation6], 0
    %14 = vsyncpa [#allocation4], 0
    // Predicated region
    $region2: #{tpu_custom_call.1} parent=1 // pred_check
      _
    $region3: #{tpu_custom_call.1} parent=1 // pred_check_branch
      %16 = sbr.rel (0) target = $region5
    $region4: #{tpu_custom_call.1} parent=1 // pred_region
      %s18 = ssub.s32 128, 128
      %19 = vsyncadd [#allocation3], %s18
      %s21 = sshll.u32 [#allocation2], 4
      %s22 = int_to_ptr.vmem [resolvable:$true] %s21
      %24 = dma.hbm_to_vmem [thread:$0]  %s0, 128, %s22, [#allocation3]
    $region5: #{tpu_custom_call.1} parent=1 // pred_fallthru
      _
    // Predicated region
    $region6: #{tpu_custom_call.1} parent=1 // pred_check
      _
    $region7: #{tpu_custom_call.1} parent=1 // pred_check_branch
      %26 = sbr.rel (0) target = $region9
    $region8: #{tpu_custom_call.1} parent=1 // pred_region
      %s28 = ssub.s32 256, 256
      %29 = vsyncadd [#allocation6], %s28
      %s30 = sshll.u32 [#allocation5], 4
      %s31 = int_to_ptr.vmem [resolvable:$true] %s30
      %36 = dma.hbm_to_vmem [thread:$0]  %s1, 256, %s31, [#allocation6], 128, 128, 8
    $region9: #{tpu_custom_call.1} parent=1 // pred_fallthru
      _
    // Predicated region
    $region10: #{tpu_custom_call.1} parent=1 // pred_check
      _
    $region11: #{tpu_custom_call.1} parent=1 // pred_check_branch
      %38 = sbr.rel (0) target = $region13
    $region12: #{tpu_custom_call.1} parent=1 // pred_region
      _
    $region13: #{tpu_custom_call.1} parent=1 // pred_fallthru
      _
    // Predicated region
    $region14: #{tpu_custom_call.1} parent=1 // pred_check
      _
    $region15: #{tpu_custom_call.1} parent=1 // pred_check_branch
      %40 = sbr.rel (0) target = $region17
    $region16: #{tpu_custom_call.1} parent=1 // pred_region
      _
    $region17: #{tpu_custom_call.1} parent=1 // pred_fallthru
      _
    // Predicated region
    $region18: #{tpu_custom_call.1} parent=1 // pred_check
      _
    $region19: #{tpu_custom_call.1} parent=1 // pred_check_branch
      %42 = sbr.rel (0) target = $region21
    $region20: #{tpu_custom_call.1} parent=1 // pred_region
      %43 = dma.done [#allocation3], 128
    $region21: #{tpu_custom_call.1} parent=1 // pred_fallthru
      _
    // Predicated region
    $region22: #{tpu_custom_call.1} parent=1 // pred_check
      _
    $region23: #{tpu_custom_call.1} parent=1 // pred_check_branch
      %45 = sbr.rel (0) target = $region25
    $region24: #{tpu_custom_call.1} parent=1 // pred_region
      %46 = dma.done [#allocation6], 256
    $region25: #{tpu_custom_call.1} parent=1 // pred_fallthru
      _
    %v47 = vld [vmem:[#allocation2] sm:$0xff]
    %v48 = vld [vmem:[#allocation5] sm:$0xff]
    %v49 = vld [vmem:[#allocation5 + $0x8] sm:$0xff]
    %vm50 = vcmask 130048
    %v52 = vsel %vm50, %v47, 0
    %54 = vmatprep.subr.mxu0 0.0
    %55 = vmatpush1.msra.mxu0 0.0
    %56 = vmatprep.subr.mxu0 0.0
    %57 = vmatpush1.msra.mxu0 0.0
    %58 = vmatprep.subr.mxu0 0.0
    %59 = vmatpush1.msra.mxu0 0.0
    %60 = vmatprep.subr.mxu0 0.0
    %61 = vmatpush1.msra.mxu0 0.0
    %62 = vmatprep.subr.mxu0 0.0
    %63 = vmatpush1.msra.mxu0 0.0
    %64 = vmatprep.subr.mxu0 0.0
    %65 = vmatpush1.msra.mxu0 0.0
    %66 = vmatprep.subr.mxu0 0.0
    %67 = vmatpush1.msra.mxu0 0.0
    %68 = vmatprep.subr.mxu0 0.0
    %69 = vmatpush1.msra.mxu0 0.0
    %70 = vmatprep.subr.mxu0 0.0
    %71 = vmatpush1.msra.mxu0 0.0
    %72 = vmatprep.subr.mxu0 0.0
    %73 = vmatpush1.msra.mxu0 0.0
    %74 = vmatprep.subr.mxu0 0.0
    %75 = vmatpush1.msra.mxu0 0.0
    %76 = vmatprep.subr.mxu0 0.0
    %77 = vmatpush1.msra.mxu0 0.0
    %78 = vmatprep.subr.mxu0 0.0
    %79 = vmatpush1.msra.mxu0 0.0
    %80 = vmatprep.subr.mxu0 0.0
    %81 = vmatpush1.msra.mxu0 0.0
    %82 = vmatprep.subr.mxu0 0.0
    %83 = vmatpush1.msra.mxu0 %v49
    %84 = vmatprep.subr.mxu0 0.0
    %85 = vmatpush1.msra.mxu0 %v48
    %86 = vmatprep.subr.mxu0 0.0
    %87 = vmatpush2.msra.mxu0 0.0
    %88 = vmatprep.subr.mxu0 0.0
    %89 = vmatpush2.msra.mxu0 0.0
    %90 = vmatprep.subr.mxu0 0.0
    %91 = vmatpush2.msra.mxu0 0.0
    %92 = vmatprep.subr.mxu0 0.0
    %93 = vmatpush2.msra.mxu0 0.0
    %94 = vmatprep.subr.mxu0 0.0
    %95 = vmatpush2.msra.mxu0 0.0
    %96 = vmatprep.subr.mxu0 0.0
    %97 = vmatpush2.msra.mxu0 0.0
    %98 = vmatprep.subr.mxu0 0.0
    %99 = vmatpush2.msra.mxu0 0.0
    %100 = vmatprep.subr.mxu0 0.0
    %101 = vmatpush2.msra.mxu0 0.0
    %102 = vmatprep.subr.mxu0 0.0
    %103 = vmatpush2.msra.mxu0 0.0
    %104 = vmatprep.subr.mxu0 0.0
    %105 = vmatpush2.msra.mxu0 0.0
    %106 = vmatprep.subr.mxu0 0.0
    %107 = vmatpush2.msra.mxu0 0.0
    %108 = vmatprep.subr.mxu0 0.0
    %109 = vmatpush2.msra.mxu0 0.0
    %110 = vmatprep.subr.mxu0 0.0
    %111 = vmatpush2.msra.mxu0 0.0
    %112 = vmatprep.subr.mxu0 0.0
    %113 = vmatpush2.msra.mxu0 0.0
    %114 = vmatprep.subr.mxu0 0.0
    %115 = vmatpush2.msra.mxu0 0.0
    %116 = vmatprep.subr.mxu0 0.0
    %117 = vmatpush2.msra.mxu0 0.0
    %118 = vmatprep.mubr.f32.mxu0 0.0
    %119 = vmatmul.mubr.f32.gmra.mxu0 %v52
    %v120 = vpop.f32.mrf.mxu0
    %v121 = vadd.f32 0.0, %v120
    %v122 = vpop.f32.mrf.mxu0
    %123 = vdwg.mxu0
    %v124 = vld [vmem:[%s2] sm:$0x3]
    %v125 = vlaneseq
    %v126 = vshrl.u32 %v125, 7
    %v127 = vsub.s32 0, %v126
    %v128 = vrot.slane %v124, %v127
    %v129 = vmul.f32 %v121, %v128
    %130 = vadd.xlane.f32.xlu0 %v129
    %v131 = vpop.xlane.xlu0 %130
    %vm132 = vcmask 7168
    %133 = vst.msk [vmem:[%s5] sm:$0xff] %vm132, %v131
    %v134 = vlaneseq
    %v135 = vshrl.u32 %v134, 7
    %v136 = vsub.s32 1, %v135
    %v137 = vrot.slane %v124, %v136
    %v138 = vmul.f32 %v121, %v137
    %139 = vadd.xlane.f32.xlu0 %v138
    %v140 = vpop.xlane.xlu0 %139
    %141 = vst.msk [vmem:[%s6] sm:$0xff] %vm132, %v140
    %v142 = vld [vmem:[%s3] sm:$0x1]
    %v144 = vlaneseq
    %v145 = vshrl.u32 %v144, 7
    %v146 = vsub.s32 0, %v145
    %v147 = vrot.slane %v142, %v146
    %v149 = vadd.f32 %v121, %v147
    %150 = vst [vmem:[#allocation7] sm:$0xff] %v149
    // Predicated region
    $region26: #{tpu_custom_call.1} parent=1 // pred_check
      _
    $region27: #{tpu_custom_call.1} parent=1 // pred_check_branch
      %152 = sbr.rel (0) target = $region29
    $region28: #{tpu_custom_call.1} parent=1 // pred_region
      %s154 = ssub.s32 128, 128
      %155 = vsyncadd [#allocation4], %s154
      %s157 = sshll.u32 [#allocation7], 4
      %s158 = int_to_ptr.vmem [resolvable:$true] %s157
      %160 = dma.vmem_to_hbm [thread:$0]  %s158, 128, %s4, [#allocation4]
    $region29: #{tpu_custom_call.1} parent=1 // pred_fallthru
      _
    // Predicated region
    $region30: #{tpu_custom_call.1} parent=1 // pred_check
      _
    $region31: #{tpu_custom_call.1} parent=1 // pred_check_branch
      %162 = sbr.rel (0) target = $region33
    $region32: #{tpu_custom_call.1} parent=1 // pred_region
      _
    $region33: #{tpu_custom_call.1} parent=1 // pred_fallthru
      _
    // Predicated region
    $region34: #{tpu_custom_call.1} parent=1 // pred_check
      _
    $region35: #{tpu_custom_call.1} parent=1 // pred_check_branch
      %164 = sbr.rel (0) target = $region37
    $region36: #{tpu_custom_call.1} parent=1 // pred_region
      _
    $region37: #{tpu_custom_call.1} parent=1 // pred_fallthru
      _
    // Predicated region
    $region38: #{tpu_custom_call.1} parent=1 // pred_check
      _
    $region39: #{tpu_custom_call.1} parent=1 // pred_check_branch
      %166 = sbr.rel (0) target = $region41
    $region40: #{tpu_custom_call.1} parent=1 // pred_region
      %167 = dma.done [#allocation4], 128
    $region41: #{tpu_custom_call.1} parent=1 // pred_fallthru
      _
    // Predicated region
    $region42: #{tpu_custom_call.1} parent=1 // pred_check
      _
    $region43: #{tpu_custom_call.1} parent=1 // pred_check_branch
      %169 = sbr.rel (0) target = $region45
    $region44: #{tpu_custom_call.1} parent=1 // pred_region
      _
    $region45: #{tpu_custom_call.1} parent=1 // pred_fallthru
      _
    // Predicated region
    $region46: #{tpu_custom_call.1} parent=1 // pred_check
      _
    $region47: #{tpu_custom_call.1} parent=1 // pred_check_branch
      %171 = sbr.rel (0) target = $region49
    $region48: #{tpu_custom_call.1} parent=1 // pred_region
      _
    $region49: #{tpu_custom_call.1} parent=1 // pred_fallthru
      _
    %172 = vsyncpa [#allocation3], 1
    %173 = vsyncpa [#allocation6], 1
    %174 = vsyncpa [#allocation4], 1

</llo_original>
